<compile_context>
chip_gen: v5e
topology: v5e:2x2
jax: 0.10.0
libtpu: 0.0.40
codegen_flags: <defaults>
</compile_context>

<pallas_src>
import functools

import jax
import jax.numpy as jnp
from jax.experimental import pallas as pl
from jax.experimental.pallas import tpu as pltpu


def _round_up(x: int, m: int) -> int:
    return ((x + m - 1) // m) * m


def prepare_dynamics_params(w_r, b_r, w_h, b_h, param_dtype=None):
    """One-time fusion of the reward / dynamics heads into lane-dense slabs.

    Weights are stored as (in_features, out_features), i.e. transposed relative
    to PyTorch's (out, in) layout:
        w_r: (hidden+action_dim, 1),      b_r: (1,)
        w_h: (hidden+action_dim, hidden), b_h: (hidden,)

    Returns (w_hpart, w_apart, b_full):
        w_hpart: (hidden, n_pad)      fused-weight rows multiplying h
        w_apart: (action_dim, n_pad)  fused-weight rows multiplying a_onehot
        b_full : (1, n_pad)           fused bias
    Column layout: [0, hidden) -> tanh head, column `hidden` -> reward, rest 0.
    Call this ONCE per parameter set (it is pure per-call overhead otherwise).
    """
    d, hidden = w_h.shape
    assert w_r.shape == (d, 1) and d > hidden
    if param_dtype is None:
        param_dtype = w_h.dtype

    n_pad = _round_up(hidden + 1, 128)            # lane-dense output slab width
    w_full = jnp.zeros((d, n_pad), param_dtype)
    w_full = w_full.at[:, :hidden].set(w_h.astype(param_dtype))
    w_full = w_full.at[:, hidden:hidden + 1].set(w_r.astype(param_dtype))
    b_full = jnp.zeros((1, n_pad), param_dtype)
    b_full = b_full.at[:, :hidden].set(b_h.reshape(1, hidden).astype(param_dtype))
    b_full = b_full.at[:, hidden].set(b_r.reshape(()).astype(param_dtype))

    # Split the contraction rows so the [h | a_onehot] concat never hits HBM.
    w_hpart = w_full[:hidden]                     # (hidden, n_pad)
    w_apart = w_full[hidden:]                     # (action_dim, n_pad)
    return w_hpart, w_apart, b_full


def _dynamics_kernel(h_ref, a_ref, wh_ref, wa_ref, b_ref, nh_ref, rw_ref, *,
                     hidden, r_start):
    """Fused Dynamics forward for one batch tile.

    h_ref : (tile, hidden)        current hidden state
    a_ref : (tile, action_dim)    one-hot action
    wh_ref: (hidden, n_pad)       fused-weight rows for the `h` part (resident)
    wa_ref: (action_dim, n_pad)   fused-weight rows for the action part (resident)
    b_ref : (1, n_pad)            fused bias (resident)
    nh_ref: (tile, hidden)        tanh dynamics head, written directly
    rw_ref: (tile, 128)           lane-aligned slab containing the reward column
    """
    # One fused contraction, split over [h | a_onehot] (no concat needed).
    acc = jnp.dot(h_ref[...], wh_ref[...], preferred_element_type=jnp.float32)
    acc = acc + jnp.dot(a_ref[...], wa_ref[...], preferred_element_type=jnp.float32)
    acc = acc + b_ref[...].astype(jnp.float32)

    # tanh only on the dynamics-head columns (static slice -- no iota/where,
    # no wasted EUP work on padding / reward columns).
    nh_ref[...] = jnp.tanh(acc[:, :hidden]).astype(nh_ref.dtype)
    # 128-wide lane-aligned block that contains the reward column (at local
    # offset hidden - r_start); stored linearly, wrapper picks the column.
    rw_ref[...] = acc[:, r_start:r_start + 128].astype(rw_ref.dtype)


def _auto_tile_b(hidden, action_dim, n_pad, act_itemsize, resident_bytes,
                 max_tile=2048, vmem_budget=14 * 1024 * 1024):
    """Pick the largest batch tile that keeps VMEM under a conservative budget
    (fits even v5e's 16 MiB default scoped VMEM, with headroom on v6e/v7x)."""
    avail = vmem_budget - 2 * resident_bytes          # weights, assume 2 buffers
    per_row = (2 * (hidden + action_dim) * act_itemsize   # double-buffered inputs
               + 2 * (hidden + 128) * act_itemsize        # double-buffered outputs
               + 2 * 4 * n_pad)                           # f32 accumulator temps
    tile = max(avail // per_row, 8)
    tile = min(int(tile), max_tile)
    return max((tile // 8) * 8, 8)


def dynamics_forward(h, a_onehot, w_hpart, w_apart, b_full, *, tile_b=None,
                     core_parallel=False, vmem_limit_bytes=32 * 1024 * 1024):
    """Pallas Dynamics.forward(h, a_onehot) -> (reward, next_h).

    Takes the pre-fused parameters from `prepare_dynamics_params`.
    Outputs inherit h.dtype (with bf16 inputs the reward comes back in bf16).
    Set core_parallel=True on v7x to shard batch tiles across both TensorCores.
    """
    B, hidden = h.shape
    action_dim = a_onehot.shape[-1]
    n_pad = w_hpart.shape[-1]
    assert w_hpart.shape == (hidden, n_pad)
    assert w_apart.shape == (action_dim, n_pad)
    assert b_full.shape == (1, n_pad)

    r_start = (hidden // 128) * 128        # lane-aligned block holding the reward
    r_off = hidden - r_start               # reward column inside that block

    if tile_b is None:
        act_itemsize = jnp.dtype(h.dtype).itemsize
        w_itemsize = jnp.dtype(w_hpart.dtype).itemsize
        resident = (w_hpart.size + w_apart.size + b_full.size) * w_itemsize
        tile_b = _auto_tile_b(hidden, action_dim, n_pad, act_itemsize, resident)

    if B <= tile_b:
        tile_b = B                          # single full-array block, no padding
    grid = (pl.cdiv(B, tile_b),)            # partial last block masked by Pallas

    kernel = functools.partial(_dynamics_kernel, hidden=hidden, r_start=r_start)
    sem = (pltpu.CORE_PARALLEL,) if core_parallel else (pltpu.PARALLEL,)

    next_h, rw_slab = pl.pallas_call(
        kernel,
        out_shape=(
            jax.ShapeDtypeStruct((B, hidden), h.dtype),   # next_h, written directly
            jax.ShapeDtypeStruct((B, 128), h.dtype),      # reward slab
        ),
        grid=grid,
        in_specs=[
            pl.BlockSpec((tile_b, hidden), lambda i: (i, 0)),       # h tile
            pl.BlockSpec((tile_b, action_dim), lambda i: (i, 0)),   # a_onehot tile
            # Resident operands (constant index_map -> DMA'd once, reused).
            # NOTE: pipeline_mode=pl.Buffered(1) would single-buffer these
            # never-changing blocks; kept on default pipelining for portability.
            pl.BlockSpec((hidden, n_pad), lambda i: (0, 0)),        # W (h rows)
            pl.BlockSpec((action_dim, n_pad), lambda i: (0, 0)),    # W (a rows)
            pl.BlockSpec((1, n_pad), lambda i: (0, 0)),             # bias
        ],
        out_specs=(
            pl.BlockSpec((tile_b, hidden), lambda i: (i, 0)),
            pl.BlockSpec((tile_b, 128), lambda i: (i, 0)),
        ),
        compiler_params=pltpu.CompilerParams(
            dimension_semantics=sem,
            vmem_limit_bytes=vmem_limit_bytes,
        ),
    )(h, a_onehot, w_hpart, w_apart, b_full)

    reward = rw_slab[:, r_off:r_off + 1]    # (B, 1), tiny slice
    return reward, next_h


def init_dynamics_params(key, hidden, action_dim, dtype=jnp.float32):
    """Deterministic init mimicking PyTorch nn.Linear (uniform +-1/sqrt(fan_in)).

    Weights are stored as (in_features, out_features), i.e. already transposed
    relative to PyTorch's (out, in) layout.
    """
    d = hidden + action_dim
    bound = 1.0 / jnp.sqrt(jnp.array(d, dtype=jnp.float32))
    k1, k2, k3, k4 = jax.random.split(key, 4)
    w_r = jax.random.uniform(k1, (d, 1), dtype, -bound, bound)
    b_r = jax.random.uniform(k2, (1,), dtype, -bound, bound)
    w_h = jax.random.uniform(k3, (d, hidden), dtype, -bound, bound)
    b_h = jax.random.uniform(k4, (hidden,), dtype, -bound, bound)
    return w_r, b_r, w_h, b_h


if __name__ == "__main__":
    key = jax.random.PRNGKey(0)
    B, hidden, action_dim = 2, 32, 8

    k_params, k_h, k_a = jax.random.split(key, 3)
    w_r, b_r, w_h, b_h = init_dynamics_params(k_params, hidden, action_dim)

    h_in = jax.random.normal(k_h, (B, hidden), jnp.float32)
    act = jax.random.randint(k_a, (B,), 0, action_dim)
    a_onehot = jax.nn.one_hot(act, action_dim, dtype=jnp.float32)

    # Plain-JAX reference (same math as the PyTorch forward).
    x_ref = jnp.concatenate([h_in, a_onehot], axis=-1)
    reward_ref = x_ref @ w_r + b_r
    next_h_ref = jnp.tanh(x_ref @ w_h + b_h)

    # --- f32 path ------------------------------------------------------------
    fused_f32 = prepare_dynamics_params(w_r, b_r, w_h, b_h)     # one-time prep
    reward, next_h = dynamics_forward(h_in, a_onehot, *fused_f32)
    jax.block_until_ready((reward, next_h))
    assert reward.shape == (B, 1) and next_h.shape == (B, hidden)
    assert jnp.allclose(reward, reward_ref, atol=1e-5, rtol=1e-5)
    assert jnp.allclose(next_h, next_h_ref, atol=1e-5, rtol=1e-5)

    # --- bf16 path (MXU-native operands, f32 accumulation in-kernel) ---------
    fused_bf16 = prepare_dynamics_params(w_r, b_r, w_h, b_h,
                                         param_dtype=jnp.bfloat16)
    reward_bf, next_h_bf = dynamics_forward(h_in.astype(jnp.bfloat16),
                                            a_onehot.astype(jnp.bfloat16),
                                            *fused_bf16)
    jax.block_until_ready((reward_bf, next_h_bf))
    assert jnp.allclose(reward_bf.astype(jnp.float32), reward_ref,
                        atol=5e-2, rtol=5e-2)
    assert jnp.allclose(next_h_bf.astype(jnp.float32), next_h_ref,
                        atol=5e-2, rtol=5e-2)

    print("KERNEL_OK")
</pallas_src>

<mosaic_0001>
module attributes {stable_mosaic.version = 11 : i64} {
  func.func @_dynamics_kernel(%arg0: i32, %arg1: memref<2x32xf32, #tpu.memory_space<vmem>>, %arg2: memref<2x8xf32, #tpu.memory_space<vmem>>, %arg3: memref<32x128xf32, #tpu.memory_space<vmem>>, %arg4: memref<8x128xf32, #tpu.memory_space<vmem>>, %arg5: memref<1x128xf32, #tpu.memory_space<vmem>>, %arg6: memref<2x32xf32, #tpu.memory_space<vmem>>, %arg7: memref<2x128xf32, #tpu.memory_space<vmem>>) attributes {dimension_semantics = [#tpu.dimension_semantics<parallel>], iteration_bounds = array<i64: 1>, scalar_prefetch = 0 : i64, scratch_operands = 0 : i64, tpu.core_type = #tpu.core_type<tc>, window_params = [{transform_indices = @transform_0, window_bounds = array<i64: 2, 32>}, {transform_indices = @transform_1, window_bounds = array<i64: 2, 8>}, {pipeline_mode = #tpu.pipeline_mode<synchronous>, transform_indices = @transform_2, window_bounds = array<i64: 32, 128>}, {pipeline_mode = #tpu.pipeline_mode<synchronous>, transform_indices = @transform_3, window_bounds = array<i64: 8, 128>}, {pipeline_mode = #tpu.pipeline_mode<synchronous>, transform_indices = @transform_4, window_bounds = array<i64: 1, 128>}, {transform_indices = @transform_5, window_bounds = array<i64: 2, 32>}, {transform_indices = @transform_6, window_bounds = array<i64: 2, 128>}]} {
    %c0 = arith.constant 0 : index
    %c0_0 = arith.constant 0 : index
    %0 = vector.load %arg1[%c0, %c0_0] : memref<2x32xf32, #tpu.memory_space<vmem>>, vector<2x32xf32>
    %c0_1 = arith.constant 0 : index
    %c0_2 = arith.constant 0 : index
    %1 = vector.load %arg3[%c0_1, %c0_2] : memref<32x128xf32, #tpu.memory_space<vmem>>, vector<32x128xf32>
    %cst = arith.constant dense<0.000000e+00> : vector<2x128xf32>
    %2 = tpu.matmul %0, %1, %cst {dimension_numbers = #tpu.dot_dimension_numbers<[1], [0], [0], [1], [0, 0, 1, 1], [], []>} : vector<2x32xf32>, vector<32x128xf32>, vector<2x128xf32> -> vector<2x128xf32>
    %c0_3 = arith.constant 0 : index
    %c0_4 = arith.constant 0 : index
    %3 = vector.load %arg2[%c0_3, %c0_4] : memref<2x8xf32, #tpu.memory_space<vmem>>, vector<2x8xf32>
    %c0_5 = arith.constant 0 : index
    %c0_6 = arith.constant 0 : index
    %4 = vector.load %arg4[%c0_5, %c0_6] : memref<8x128xf32, #tpu.memory_space<vmem>>, vector<8x128xf32>
    %cst_7 = arith.constant dense<0.000000e+00> : vector<2x128xf32>
    %5 = tpu.matmul %3, %4, %cst_7 {dimension_numbers = #tpu.dot_dimension_numbers<[1], [0], [0], [1], [0, 0, 1, 1], [], []>} : vector<2x8xf32>, vector<8x128xf32>, vector<2x128xf32> -> vector<2x128xf32>
    %6 = arith.addf %2, %5 : vector<2x128xf32>
    %c0_8 = arith.constant 0 : index
    %c0_9 = arith.constant 0 : index
    %7 = vector.load %arg5[%c0_8, %c0_9] : memref<1x128xf32, #tpu.memory_space<vmem>>, vector<1x128xf32>
    %8 = vector.broadcast %7 : vector<1x128xf32> to vector<2x128xf32>
    %9 = arith.addf %6, %8 : vector<2x128xf32>
    %10 = vector.extract_strided_slice %9 {offsets = [0, 0], sizes = [2, 32], strides = [1, 1]} : vector<2x128xf32> to vector<2x32xf32>
    %11 = math.tanh %10 : vector<2x32xf32>
    %c0_10 = arith.constant 0 : index
    %c0_11 = arith.constant 0 : index
    %12 = vector.load %arg6[%c0_10, %c0_11] : memref<2x32xf32, #tpu.memory_space<vmem>>, vector<2x32xf32>
    tpu.vector_store %arg6[%c0_10, %c0_11], %11 {strides = array<i32>} : memref<2x32xf32, #tpu.memory_space<vmem>>, vector<2x32xf32>,
    %c0_12 = arith.constant 0 : index
    %c0_13 = arith.constant 0 : index
    %13 = vector.load %arg7[%c0_12, %c0_13] : memref<2x128xf32, #tpu.memory_space<vmem>>, vector<2x128xf32>
    tpu.vector_store %arg7[%c0_12, %c0_13], %9 {strides = array<i32>} : memref<2x128xf32, #tpu.memory_space<vmem>>, vector<2x128xf32>,
    return
  }
  func.func @transform_0(%arg0: i32) -> (i32, i32) {
    %c0_i32 = arith.constant 0 : i32
    %c0_i32_0 = arith.constant 0 : i32
    return %arg0, %c0_i32 : i32, i32
  }
  func.func @transform_1(%arg0: i32) -> (i32, i32) {
    %c0_i32 = arith.constant 0 : i32
    %c0_i32_0 = arith.constant 0 : i32
    return %arg0, %c0_i32 : i32, i32
  }
  func.func @transform_2(%arg0: i32) -> (i32, i32) {
    %c0_i32 = arith.constant 0 : i32
    %c0_i32_0 = arith.constant 0 : i32
    %c0_i32_1 = arith.constant 0 : i32
    return %c0_i32, %c0_i32_0 : i32, i32
  }
  func.func @transform_3(%arg0: i32) -> (i32, i32) {
    %c0_i32 = arith.constant 0 : i32
    %c0_i32_0 = arith.constant 0 : i32
    %c0_i32_1 = arith.constant 0 : i32
    return %c0_i32, %c0_i32_0 : i32, i32
  }
  func.func @transform_4(%arg0: i32) -> (i32, i32) {
    %c0_i32 = arith.constant 0 : i32
    %c0_i32_0 = arith.constant 0 : i32
    %c0_i32_1 = arith.constant 0 : i32
    return %c0_i32, %c0_i32_0 : i32, i32
  }
  func.func @transform_5(%arg0: i32) -> (i32, i32) {
    %c0_i32 = arith.constant 0 : i32
    %c0_i32_0 = arith.constant 0 : i32
    return %arg0, %c0_i32 : i32, i32
  }
  func.func @transform_6(%arg0: i32) -> (i32, i32) {
    %c0_i32 = arith.constant 0 : i32
    %c0_i32_0 = arith.constant 0 : i32
    return %arg0, %c0_i32 : i32, i32
  }
}

</mosaic_0001>

<llo_original>
// kernel: tpu_custom_call.1
$region0: #{tpu_custom_call.1}
  #allocation0 [shape = 'u32[]', space=smem, size = 0x4, offset = 0x4, fixed_abs, tag = 'smem constant byte address 0x4 - core index']
  #allocation1 [shape = 'u32[72,128]{1,0:T(1,128)}', space=vmem, size = 0x9000, scoped, tag = 'internal scratch']
  %s0 = inlined_call_operand.hbm [shape: f32[2,32], index: 0, kind: input, shape index: {}]
  %s1 = inlined_call_operand.hbm [shape: f32[2,8], index: 1, kind: input, shape index: {}]
  %s2 = inlined_call_operand.hbm [shape: f32[32,128], index: 2, kind: input, shape index: {}]
  %s3 = inlined_call_operand.hbm [shape: f32[8,128], index: 3, kind: input, shape index: {}]
  %s4 = inlined_call_operand.vmem [shape: f32[1,128], index: 4, kind: input, shape index: {}]
  %s5 = inlined_call_operand.hbm [shape: f32[2,32], index: 5, kind: output, shape index: {0}]
  %s6 = inlined_call_operand.hbm [shape: f32[2,128], index: 6, kind: output, shape index: {1}]
  %7 = xla_tuple %s5, %s6
  %s8 = sld [smem:[#allocation0]]
  $region54: #{tpu_custom_call.1} parent=0
    _
  %s10 = ssub.s32 1, %s8
  %s11 = scalar_select 0, %s10, %s8
  $region1: #{tpu_custom_call.1} parent=0
    #allocation2 [shape = 'u8[1024]{0}', space=vmem, size = 0x400, scoped, tag = 'input window, operand 0, single buffered']
    #allocation3 [shape = 's32[1]{0}', space=sflag, size = 0x4, scoped, tag = 'scoped memory for tpu_custom_call.1']
    #allocation4 [shape = 's32[1]{0}', space=sflag, size = 0x4, scoped, tag = 'scoped memory for tpu_custom_call.1']
    #allocation5 [shape = 'u8[1024]{0}', space=vmem, size = 0x400, scoped, tag = 'input window, operand 1, single buffered']
    #allocation6 [shape = 's32[1]{0}', space=sflag, size = 0x4, scoped, tag = 'scoped memory for tpu_custom_call.1']
    #allocation7 [shape = 'u8[16384]{0}', space=vmem, size = 0x4000, scoped, tag = 'input window, operand 2, single buffered']
    #allocation8 [shape = 'u8[4096]{0}', space=vmem, size = 0x1000, scoped, tag = 'input window, operand 3, single buffered']
    #allocation9 [shape = 's32[1]{0}', space=sflag, size = 0x4, scoped, tag = 'scoped memory for tpu_custom_call.1']
    #allocation10 [shape = 'u8[1024]{0}', space=vmem, size = 0x400, scoped, tag = 'output window, operand 0, single buffered']
    #allocation11 [shape = 'u8[1024]{0}', space=vmem, size = 0x400, scoped, tag = 'output window, operand 1, single buffered']
    #allocation12 [shape = 's32[1]{0}', space=sflag, size = 0x4, scoped, tag = 'scoped memory for tpu_custom_call.1']
    %12 = vsyncpa [#allocation3], 0
    %13 = vsyncpa [#allocation6], 0
    %14 = vsyncpa [#allocation9], 0
    %15 = vsyncpa [#allocation4], 0
    %16 = vsyncpa [#allocation12], 0
    // Predicated region
    $region2: #{tpu_custom_call.1} parent=1 // pred_check
      _
    $region3: #{tpu_custom_call.1} parent=1 // pred_check_branch
      %18 = sbr.rel (0) target = $region5
    $region4: #{tpu_custom_call.1} parent=1 // pred_region
      %20 = vsyncadd [#allocation3], 0
      %s22 = sshll.u32 %s0, 4
      %s23 = int_to_ptr.hbm [resolvable:$true] %s22
      %s24 = sshll.u32 [#allocation2], 4
      %s25 = int_to_ptr.vmem [resolvable:$true] %s24
      %27 = dma.hbm_to_vmem [thread:$0]  %s23, 32, %s25, [#allocation3]
    $region5: #{tpu_custom_call.1} parent=1 // pred_fallthru
      _
    // Predicated region
    $region6: #{tpu_custom_call.1} parent=1 // pred_check
      _
    $region7: #{tpu_custom_call.1} parent=1 // pred_check_branch
      %29 = sbr.rel (0) target = $region9
    $region8: #{tpu_custom_call.1} parent=1 // pred_region
      %31 = vsyncadd [#allocation6], 0
      %s33 = sshll.u32 %s1, 4
      %s34 = int_to_ptr.hbm [resolvable:$true] %s33
      %s35 = sshll.u32 [#allocation5], 4
      %s36 = int_to_ptr.vmem [resolvable:$true] %s35
      %38 = dma.hbm_to_vmem [thread:$0]  %s34, 32, %s36, [#allocation6]
    $region9: #{tpu_custom_call.1} parent=1 // pred_fallthru
      _
    // Predicated region
    $region10: #{tpu_custom_call.1} parent=1 // pred_check
      _
    $region11: #{tpu_custom_call.1} parent=1 // pred_check_branch
      %40 = sbr.rel (0) target = $region13
    $region12: #{tpu_custom_call.1} parent=1 // pred_region
      %42 = vsyncadd [#allocation6], 0
      %s43 = sshll.u32 %s2, 4
      %s44 = int_to_ptr.hbm [resolvable:$true] %s43
      %s45 = sshll.u32 [#allocation7], 4
      %s46 = int_to_ptr.vmem [resolvable:$true] %s45
      %51 = dma.hbm_to_vmem [thread:$0]  %s44, 512, %s46, [#allocation6], 128, 128, 8
    $region13: #{tpu_custom_call.1} parent=1 // pred_fallthru
      _
    // Predicated region
    $region14: #{tpu_custom_call.1} parent=1 // pred_check
      _
    $region15: #{tpu_custom_call.1} parent=1 // pred_check_branch
      %53 = sbr.rel (0) target = $region17
    $region16: #{tpu_custom_call.1} parent=1 // pred_region
      %55 = vsyncadd [#allocation9], 0
      %s57 = sshll.u32 %s3, 4
      %s58 = int_to_ptr.hbm [resolvable:$true] %s57
      %s59 = sshll.u32 [#allocation8], 4
      %s60 = int_to_ptr.vmem [resolvable:$true] %s59
      %62 = dma.hbm_to_vmem [thread:$0]  %s58, 128, %s60, [#allocation9]
    $region17: #{tpu_custom_call.1} parent=1 // pred_fallthru
      _
    // Predicated region
    $region18: #{tpu_custom_call.1} parent=1 // pred_check
      _
    $region19: #{tpu_custom_call.1} parent=1 // pred_check_branch
      %64 = sbr.rel (0) target = $region21
    $region20: #{tpu_custom_call.1} parent=1 // pred_region
      _
    $region21: #{tpu_custom_call.1} parent=1 // pred_fallthru
      _
    // Predicated region
    $region22: #{tpu_custom_call.1} parent=1 // pred_check
      _
    $region23: #{tpu_custom_call.1} parent=1 // pred_check_branch
      %66 = sbr.rel (0) target = $region25
    $region24: #{tpu_custom_call.1} parent=1 // pred_region
      %68 = dma.done [#allocation3], 32
    $region25: #{tpu_custom_call.1} parent=1 // pred_fallthru
      _
    // Predicated region
    $region26: #{tpu_custom_call.1} parent=1 // pred_check
      _
    $region27: #{tpu_custom_call.1} parent=1 // pred_check_branch
      %70 = sbr.rel (0) target = $region29
    $region28: #{tpu_custom_call.1} parent=1 // pred_region
      %72 = dma.done [#allocation6], 32
    $region29: #{tpu_custom_call.1} parent=1 // pred_fallthru
      _
    // Predicated region
    $region30: #{tpu_custom_call.1} parent=1 // pred_check
      _
    $region31: #{tpu_custom_call.1} parent=1 // pred_check_branch
      %74 = sbr.rel (0) target = $region33
    $region32: #{tpu_custom_call.1} parent=1 // pred_region
      %76 = dma.done [#allocation6], 512
    $region33: #{tpu_custom_call.1} parent=1 // pred_fallthru
      _
    // Predicated region
    $region34: #{tpu_custom_call.1} parent=1 // pred_check
      _
    $region35: #{tpu_custom_call.1} parent=1 // pred_check_branch
      %78 = sbr.rel (0) target = $region37
    $region36: #{tpu_custom_call.1} parent=1 // pred_region
      %80 = dma.done [#allocation9], 128
    $region37: #{tpu_custom_call.1} parent=1 // pred_fallthru
      _
    %v81 = vld [vmem:[#allocation2] sm:$0x3]
    %v82 = vld [vmem:[#allocation7] sm:$0xff]
    %v83 = vld [vmem:[#allocation7 + $0x8] sm:$0xff]
    %v84 = vld [vmem:[#allocation7 + $0x10] sm:$0xff]
    %v85 = vld [vmem:[#allocation7 + $0x18] sm:$0xff]
    %v86 = vld [vmem:[#allocation5] sm:$0x3]
    %v87 = vld [vmem:[#allocation8] sm:$0xff]
    %vm88 = vcmask 64512
    %v90 = vsel %vm88, %v86, 0
    %92 = vmatpush.msra.mxu0 0.0
    %93 = vmatpush.msra.mxu0 0.0
    %94 = vmatpush.msra.mxu0 0.0
    %95 = vmatpush.msra.mxu0 0.0
    %96 = vmatpush.msra.mxu0 0.0
    %97 = vmatpush.msra.mxu0 0.0
    %98 = vmatpush.msra.mxu0 0.0
    %99 = vmatpush.msra.mxu0 0.0
    %100 = vmatpush.msra.mxu0 0.0
    %101 = vmatpush.msra.mxu0 0.0
    %102 = vmatpush.msra.mxu0 0.0
    %103 = vmatpush.msra.mxu0 0.0
    %104 = vmatpush.msra.mxu0 0.0
    %105 = vmatpush.msra.mxu0 0.0
    %106 = vmatpush.msra.mxu0 0.0
    %107 = vmatpush.msra.mxu0 %v87
    %108 = vmatmul.f32.gmra.mxu0 %v90
    %v109 = vpop.f32.mrf.mxu0
    %v110 = vadd.f32 0.0, %v109
    %111 = vdwg.mxu0
    %vm112 = vcmask 261120
    %v114 = vsel %vm112, %v81, 0
    %116 = vmatpush.msra.mxu0 0.0
    %117 = vmatpush.msra.mxu0 0.0
    %118 = vmatpush.msra.mxu0 0.0
    %119 = vmatpush.msra.mxu0 0.0
    %120 = vmatpush.msra.mxu0 0.0
    %121 = vmatpush.msra.mxu0 0.0
    %122 = vmatpush.msra.mxu0 0.0
    %123 = vmatpush.msra.mxu0 0.0
    %124 = vmatpush.msra.mxu0 0.0
    %125 = vmatpush.msra.mxu0 0.0
    %126 = vmatpush.msra.mxu0 0.0
    %127 = vmatpush.msra.mxu0 0.0
    %128 = vmatpush.msra.mxu0 %v85
    %129 = vmatpush.msra.mxu0 %v84
    %130 = vmatpush.msra.mxu0 %v83
    %131 = vmatpush.msra.mxu0 %v82
    %132 = vmatmul.f32.gmra.mxu0 %v114
    %v133 = vpop.f32.mrf.mxu0
    %v134 = vadd.f32 %v110, %v133
    %135 = vdwg.mxu0
    %v136 = vld [vmem:[%s4] sm:$0x1]
    %v138 = vperm.slane %v136, 0
    %v140 = vadd.f32 %v134, %v138
    %v141 = vtanh.pop %v140
    %vm142 = vcmask 254976
    %143 = vst.msk [vmem:[#allocation10] sm:$0x3] %vm142, %v141
    %144 = vst [vmem:[#allocation11] sm:$0x3] %v140
    // Predicated region
    $region38: #{tpu_custom_call.1} parent=1 // pred_check
      _
    $region39: #{tpu_custom_call.1} parent=1 // pred_check_branch
      %146 = sbr.rel (0) target = $region41
    $region40: #{tpu_custom_call.1} parent=1 // pred_region
      %148 = vsyncadd [#allocation4], 0
      %s150 = sshll.u32 [#allocation10], 4
      %s151 = int_to_ptr.vmem [resolvable:$true] %s150
      %s152 = sshll.u32 %s5, 4
      %s153 = int_to_ptr.hbm [resolvable:$true] %s152
      %155 = dma.vmem_to_hbm [thread:$0]  %s151, 32, %s153, [#allocation4]
    $region41: #{tpu_custom_call.1} parent=1 // pred_fallthru
      _
    // Predicated region
    $region42: #{tpu_custom_call.1} parent=1 // pred_check
      _
    $region43: #{tpu_custom_call.1} parent=1 // pred_check_branch
      %157 = sbr.rel (0) target = $region45
    $region44: #{tpu_custom_call.1} parent=1 // pred_region
      %159 = vsyncadd [#allocation12], 0
      %s161 = sshll.u32 [#allocation11], 4
      %s162 = int_to_ptr.vmem [resolvable:$true] %s161
      %s163 = sshll.u32 %s6, 4
      %s164 = int_to_ptr.hbm [resolvable:$true] %s163
      %166 = dma.vmem_to_hbm [thread:$0]  %s162, 32, %s164, [#allocation12]
    $region45: #{tpu_custom_call.1} parent=1 // pred_fallthru
      _
    // Predicated region
    $region46: #{tpu_custom_call.1} parent=1 // pred_check
      _
    $region47: #{tpu_custom_call.1} parent=1 // pred_check_branch
      %168 = sbr.rel (0) target = $region49
    $region48: #{tpu_custom_call.1} parent=1 // pred_region
      %170 = dma.done [#allocation4], 32
    $region49: #{tpu_custom_call.1} parent=1 // pred_fallthru
      _
    // Predicated region
    $region50: #{tpu_custom_call.1} parent=1 // pred_check
      _
    $region51: #{tpu_custom_call.1} parent=1 // pred_check_branch
      %172 = sbr.rel (0) target = $region53
    $region52: #{tpu_custom_call.1} parent=1 // pred_region
      %174 = dma.done [#allocation12], 32
    $region53: #{tpu_custom_call.1} parent=1 // pred_fallthru
      _
    %175 = vsyncpa [#allocation3], 1
    %176 = vsyncpa [#allocation6], 1
    %177 = vsyncpa [#allocation9], 1
    %178 = vsyncpa [#allocation4], 1
    %179 = vsyncpa [#allocation12], 1

</llo_original>
